<compile_context>
chip_gen: v7x
topology: tpu7x:2x2x1
jax: 0.10.0
libtpu: 0.0.40
codegen_flags: <defaults>
</compile_context>

<pallas_src>
import jax
import jax.numpy as jnp
import numpy as np
from jax import lax
from jax.experimental import pallas as pl
from jax.experimental.pallas import tpu as pltpu


# ---------------------------------------------------------------------------
# Kernel 1: hoisted input projection  gi_g = x @ W_ih_g + b_g  (g = r, z, n)
# One big (T*B, I) x (I, H) matmul per gate — amortized over all time steps.
# Results stored bf16 (halves HBM traffic of the recurrence's dominant stream).
# ---------------------------------------------------------------------------
def _input_proj_kernel(x_ref, w_ref, b_ref, gr_ref, gz_ref, gn_ref):
    x = x_ref[...]                                   # (tm, I)  bf16
    gr_ref[...] = (jnp.dot(x, w_ref[0], preferred_element_type=jnp.float32)
                   + b_ref[0]).astype(gr_ref.dtype)
    gz_ref[...] = (jnp.dot(x, w_ref[1], preferred_element_type=jnp.float32)
                   + b_ref[1]).astype(gz_ref.dtype)
    gn_ref[...] = (jnp.dot(x, w_ref[2], preferred_element_type=jnp.float32)
                   + b_ref[2]).astype(gn_ref.dtype)


def _pick_row_tile(rows, cap=1024):
    if rows <= cap:
        return rows
    for cand in range(cap, 7, -8):                   # multiple-of-8 divisor
        if rows % cand == 0:
            return cand
    return rows


def gru_input_proj_pallas(x2d, wih, bias):
    """x2d: (T*B, I) bf16, wih: (3, I, H) bf16, bias: (3, 1, H) f32
    -> three (T*B, H) bf16 gate pre-activations (r, z, n)."""
    rows, in_sz = x2d.shape
    H = wih.shape[-1]
    tm = _pick_row_tile(rows)
    return pl.pallas_call(
        _input_proj_kernel,
        out_shape=tuple(jax.ShapeDtypeStruct((rows, H), jnp.bfloat16)
                        for _ in range(3)),
        grid_spec=pltpu.PrefetchScalarGridSpec(
            num_scalar_prefetch=0,
            grid=(rows // tm,),
            in_specs=[
                pl.BlockSpec((tm, in_sz), lambda i: (i, 0)),       # x rows
                pl.BlockSpec((3, in_sz, H), lambda i: (0, 0, 0)),  # W_ih (per gate)
                pl.BlockSpec((3, 1, H), lambda i: (0, 0, 0)),      # folded bias
            ],
            out_specs=[pl.BlockSpec((tm, H), lambda i: (i, 0)) for _ in range(3)],
        ),
        compiler_params=pltpu.CompilerParams(dimension_semantics=("parallel",)),
    )(x2d, wih, bias)


# ---------------------------------------------------------------------------
# Kernel 2: the sequential GRU recurrence.  Only h @ W_hh per step.
# Grid = (batch_tiles ["parallel"], time_chunks ["arbitrary"]).
# ---------------------------------------------------------------------------
def _gru_recurrence_kernel(tmax_ref,                       # SMEM scalar prefetch
                           gr_ref, gz_ref, gn_ref,         # (TC, TB, H) bf16
                           h0_ref, len_ref,                 # (TB, H) f32, (TB, 1) i32
                           whh_ref, bhn_ref,                # (3, H, H) bf16, (1, H) f32
                           y_ref, hn_ref,                   # (TC, TB, H), (TB, H)
                           h_scratch):                      # VMEM (TB, H) f32
    bi = pl.program_id(0)
    ti = pl.program_id(1)
    tc = y_ref.shape[0]
    t0 = ti * tc

    @pl.when(ti == 0)
    def _():
        h_scratch[...] = h0_ref[...]

    lens = len_ref[...]                                    # (TB, 1) int32
    chunk_live = t0 < tmax_ref[bi]                         # any valid step in chunk?

    @pl.when(chunk_live)
    def _():
        bhn = bhn_ref[...]                                 # (1, H) hoisted out of loop

        def step(tt, h):
            # h: (TB, H) f32 carried in vregs; cast to bf16 only for the MXU.
            h_b = h.astype(whh_ref.dtype)
            gh_r = jnp.dot(h_b, whh_ref[0], preferred_element_type=jnp.float32)
            gh_z = jnp.dot(h_b, whh_ref[1], preferred_element_type=jnp.float32)
            gh_n = jnp.dot(h_b, whh_ref[2], preferred_element_type=jnp.float32)
            r = jax.nn.sigmoid(gr_ref[tt] + gh_r)          # b_hh_r folded upstream
            z = jax.nn.sigmoid(gz_ref[tt] + gh_z)          # b_hh_z folded upstream
            n = jnp.tanh(gn_ref[tt] + r * (gh_n + bhn))
            h_new = (1.0 - z) * n + z * h
            valid = lens > (t0 + tt)                       # (TB, 1) packed-seq mask
            y_ref[tt] = jnp.where(valid, h_new, 0.0).astype(y_ref.dtype)
            return jnp.where(valid, h_new, h)              # freeze h past lengths[b]

        h_scratch[...] = lax.fori_loop(0, tc, step, h_scratch[...], unroll=True)

    @pl.when(jnp.logical_not(chunk_live))
    def _():
        # Chunk lies entirely past every sequence of this batch tile:
        # outputs are zero (pad_packed_sequence) and h stays frozen — skip compute.
        y_ref[...] = jnp.zeros(y_ref.shape, y_ref.dtype)

    @pl.when(ti == pl.num_programs(1) - 1)
    def _():
        hn_ref[...] = h_scratch[...]


def gru_layer_pallas(gi_r, gi_z, gi_n, h0, lengths_b1, tile_max, whh, bhn,
                     *, time_chunk, batch_tile, out_dtype=jnp.float32):
    """gi_*: (T, B, H) bf16 precomputed input gates, h0: (B, H) f32,
    lengths_b1: (B, 1) i32, tile_max: (B // batch_tile,) i32 (scalar prefetch),
    whh: (3, H, H) bf16, bhn: (1, H) f32 (b_hh for the n gate only)."""
    T, B, H = gi_r.shape
    tc, tb = time_chunk, batch_tile
    nt, nb = T // tc, B // tb

    # NOTE: weight / bias / h0 / length blocks are grid-invariant; Pallas skips
    # re-fetching blocks whose index does not change, so they stay resident.
    y, hn = pl.pallas_call(
        _gru_recurrence_kernel,
        out_shape=(jax.ShapeDtypeStruct((T, B, H), out_dtype),
                   jax.ShapeDtypeStruct((B, H), jnp.float32)),
        grid_spec=pltpu.PrefetchScalarGridSpec(
            num_scalar_prefetch=1,                                   # tile_max -> SMEM
            grid=(nb, nt),
            in_specs=[
                pl.BlockSpec((tc, tb, H), lambda bi, ti, tmax: (ti, bi, 0)),   # gi_r
                pl.BlockSpec((tc, tb, H), lambda bi, ti, tmax: (ti, bi, 0)),   # gi_z
                pl.BlockSpec((tc, tb, H), lambda bi, ti, tmax: (ti, bi, 0)),   # gi_n
                pl.BlockSpec((tb, H), lambda bi, ti, tmax: (bi, 0)),           # h0
                pl.BlockSpec((tb, 1), lambda bi, ti, tmax: (bi, 0)),           # lengths
                pl.BlockSpec((3, H, H), lambda bi, ti, tmax: (0, 0, 0)),       # W_hh
                pl.BlockSpec((1, H), lambda bi, ti, tmax: (0, 0)),             # b_hn
            ],
            out_specs=[
                pl.BlockSpec((tc, tb, H), lambda bi, ti, tmax: (ti, bi, 0)),   # y
                pl.BlockSpec((tb, H), lambda bi, ti, tmax: (bi, 0)),           # h_final
            ],
            scratch_shapes=[pltpu.VMEM((tb, H), jnp.float32)],
        ),
        compiler_params=pltpu.CompilerParams(
            dimension_semantics=("parallel", "arbitrary")),
    )(tile_max, gi_r, gi_z, gi_n, h0, lengths_b1, whh, bhn)
    return y, hn


# ---------------------------------------------------------------------------
# Encoder wrapper (matches the PyTorch module's forward signature/semantics).
# ---------------------------------------------------------------------------
def _pick_time_chunk(T, cap=32):
    for c in range(min(T, cap), 0, -1):
        if T % c == 0:
            return c
    return T


def _pick_batch_tile(B):
    # Split the batch across two tiles (two v7x TensorCores) when sublane-aligned.
    return B // 2 if (B % 16 == 0) else B


def encoder_forward(params, input_tensor, hidden_tensor, input_lengths,
                    *, time_chunk=None, batch_tile=None):
    """input_tensor: (B, T, input_size), hidden_tensor: (num_layers, B, H),
    input_lengths: concrete python list / np array of ints (as in PyTorch)."""
    B, T, _ = input_tensor.shape
    lengths = np.asarray(input_lengths, dtype=np.int32)
    max_len = int(lengths.max())
    lengths_b1 = jnp.asarray(lengths.reshape(B, 1), jnp.int32)

    tc = _pick_time_chunk(T) if time_chunk is None else int(time_chunk)
    tb = _pick_batch_tile(B) if batch_tile is None else int(batch_tile)
    assert T % tc == 0 and B % tb == 0
    nb = B // tb
    tile_max = jnp.asarray(
        np.array([lengths[i * tb:(i + 1) * tb].max() for i in range(nb)], np.int32))

    x = jnp.transpose(input_tensor.astype(jnp.float32), (1, 0, 2))   # (T, B, I)

    num_layers = len(params)
    h_finals = []
    for layer_idx, p in enumerate(params):
        in_sz = x.shape[-1]
        H = p["whh"].shape[-1]

        # Fold b_hh for the r/z gates into the hoisted projection bias (identical
        # math); only b_hn stays inside the recurrence (under the r * (.) term).
        b_fold = jnp.stack([p["bih"][0] + p["bhh"][0],
                            p["bih"][1] + p["bhh"][1],
                            p["bih"][2]], axis=0)                     # (3, 1, H)

        # (1) Hoisted input projection: one big MXU matmul over all T*B rows.
        x2d = x.reshape(T * B, in_sz).astype(jnp.bfloat16)
        gr, gz, gn = gru_input_proj_pallas(
            x2d, p["wih"].astype(jnp.bfloat16), b_fold)
        gr, gz, gn = (g.reshape(T, B, H) for g in (gr, gz, gn))

        # (2) Sequential recurrence (only h @ W_hh inside the loop).  Intermediate
        # layers emit bf16 y (cast to bf16 for the next layer's MXU anyway).
        is_last = layer_idx == num_layers - 1
        y, hn = gru_layer_pallas(
            gr, gz, gn,
            hidden_tensor[layer_idx].astype(jnp.float32),
            lengths_b1, tile_max,
            p["whh"].astype(jnp.bfloat16), p["bhh"][2],
            time_chunk=tc, batch_tile=tb,
            out_dtype=jnp.float32 if is_last else jnp.bfloat16)

        x = y                            # next layer consumes this layer's outputs
        h_finals.append(hn)

    output = jnp.transpose(x, (1, 0, 2))[:, :max_len]    # (B, max_len, H) f32
    hidden = jnp.stack(h_finals, axis=0)                 # (num_layers, B, H) f32
    return output, hidden


def init_encoder_params(key, input_size, hidden_size, num_layers=1):
    """PyTorch-like uniform(-1/sqrt(H), 1/sqrt(H)) init, stored per gate:
    wih: (3, in, H), whh: (3, H, H), biases: (3, 1, H) — gate order (r, z, n)."""
    params = []
    bound = 1.0 / np.sqrt(hidden_size)
    for layer in range(num_layers):
        in_sz = input_size if layer == 0 else hidden_size
        key, k1, k2, k3, k4 = jax.random.split(key, 5)
        wih = jax.random.uniform(k1, (3 * hidden_size, in_sz), jnp.float32, -bound, bound)
        whh = jax.random.uniform(k2, (3 * hidden_size, hidden_size), jnp.float32, -bound, bound)
        bih = jax.random.uniform(k3, (3 * hidden_size,), jnp.float32, -bound, bound)
        bhh = jax.random.uniform(k4, (3 * hidden_size,), jnp.float32, -bound, bound)
        params.append(dict(
            wih=jnp.transpose(wih.reshape(3, hidden_size, in_sz), (0, 2, 1)),
            whh=jnp.transpose(whh.reshape(3, hidden_size, hidden_size), (0, 2, 1)),
            bih=bih.reshape(3, 1, hidden_size),
            bhh=bhh.reshape(3, 1, hidden_size)))
    return params


# ---------------------------------------------------------------------------
# Pure-NumPy reference mirroring the kernel numerics (bf16 MXU operands, bf16
# stored gate pre-activations, f32 accumulation & gate math) for a tight check.
# ---------------------------------------------------------------------------
def _round_bf16(a):
    return np.asarray(jnp.asarray(np.asarray(a, np.float32), jnp.bfloat16)
                      .astype(jnp.float32))


def _reference_encoder(params, input_tensor, hidden_tensor, input_lengths):
    x = np.asarray(input_tensor, np.float32)
    B, T, _ = x.shape
    lengths = np.asarray(input_lengths)
    h_finals = []
    for layer_idx, p in enumerate(params):
        wih = _round_bf16(p["wih"])                  # (3, in, H)
        whh = _round_bf16(p["whh"])                  # (3, H, H)
        bih = np.asarray(p["bih"], np.float32)
        bhh = np.asarray(p["bhh"], np.float32)
        H = whh.shape[-1]
        h = np.asarray(hidden_tensor[layer_idx], np.float32)
        xb = _round_bf16(x)                          # bf16 MXU inputs
        # Hoisted input projection, b_hh folded for r/z, stored bf16.
        gi = []
        for g in range(3):
            bias = bih[g, 0] + (bhh[g, 0] if g < 2 else 0.0)
            gi.append(_round_bf16(np.einsum('bti,ih->bth', xb, wih[g]) + bias))
        ys = np.zeros((B, T, H), np.float32)
        for t in range(T):
            hb = _round_bf16(h)
            gh = [hb @ whh[g] for g in range(3)]
            r = 1.0 / (1.0 + np.exp(-(gi[0][:, t] + gh[0])))
            z = 1.0 / (1.0 + np.exp(-(gi[1][:, t] + gh[1])))
            n = np.tanh(gi[2][:, t] + r * (gh[2] + bhh[2, 0]))
            h_new = (1.0 - z) * n + z * h
            valid = (lengths > t)[:, None]
            h = np.where(valid, h_new, h)
            ys[:, t] = np.where(valid, h_new, 0.0)
        x = ys
        h_finals.append(h)
    max_len = int(lengths.max())
    return x[:, :max_len], np.stack(h_finals, 0)


if __name__ == "__main__":
    B, T, INPUT_SIZE, HIDDEN_SIZE, NUM_LAYERS = 2, 12, 4, 32, 2

    key = jax.random.PRNGKey(0)
    key, kx, kh = jax.random.split(key, 3)

    params = init_encoder_params(key, INPUT_SIZE, HIDDEN_SIZE, NUM_LAYERS)

    # Unsorted lengths (enforce_sorted=False); max length < T so the last time
    # chunk exercises the SMEM-driven skip path.
    input_lengths = [5, 8]
    x = jax.random.normal(kx, (B, T, INPUT_SIZE), jnp.float32)
    pad_mask = (np.arange(T)[None, :] < np.asarray(input_lengths)[:, None])
    x = x * jnp.asarray(pad_mask[:, :, None], jnp.float32)     # zero the padding
    h0 = jax.random.normal(kh, (NUM_LAYERS, B, HIDDEN_SIZE), jnp.float32)

    out, hN = encoder_forward(params, x, h0, input_lengths, time_chunk=4)
    out = jax.block_until_ready(out)
    hN = jax.block_until_ready(hN)

    # Correctness check (reference emulates the same bf16-operand numerics).
    ref_out, ref_hN = _reference_encoder(params, x, h0, input_lengths)
    np.testing.assert_allclose(np.asarray(out), ref_out, atol=1e-2, rtol=1e-2)
    np.testing.assert_allclose(np.asarray(hN), ref_hN, atol=1e-2, rtol=1e-2)

    print("KERNEL_OK")
</pallas_src>

<mosaic_0001>
module attributes {stable_mosaic.version = 11 : i64} {
  func.func @_input_proj_kernel(%arg0: i32, %arg1: memref<24x4xbf16, #tpu.memory_space<vmem>>, %arg2: memref<3x4x32xbf16, #tpu.memory_space<vmem>>, %arg3: memref<3x1x32xf32, #tpu.memory_space<vmem>>, %arg4: memref<24x32xbf16, #tpu.memory_space<vmem>>, %arg5: memref<24x32xbf16, #tpu.memory_space<vmem>>, %arg6: memref<24x32xbf16, #tpu.memory_space<vmem>>) attributes {dimension_semantics = [#tpu.dimension_semantics<parallel>], iteration_bounds = array<i64: 1>, scalar_prefetch = 0 : i64, scratch_operands = 0 : i64, tpu.core_type = #tpu.core_type<tc>, window_params = [{transform_indices = @transform_0, window_bounds = array<i64: 24, 4>}, {pipeline_mode = #tpu.pipeline_mode<synchronous>, transform_indices = @transform_1, window_bounds = array<i64: 3, 4, 32>}, {pipeline_mode = #tpu.pipeline_mode<synchronous>, transform_indices = @transform_2, window_bounds = array<i64: 3, 1, 32>}, {transform_indices = @transform_3, window_bounds = array<i64: 24, 32>}, {transform_indices = @transform_4, window_bounds = array<i64: 24, 32>}, {transform_indices = @transform_5, window_bounds = array<i64: 24, 32>}]} {
    %c0 = arith.constant 0 : index
    %c0_0 = arith.constant 0 : index
    %0 = vector.load %arg1[%c0, %c0_0] : memref<24x4xbf16, #tpu.memory_space<vmem>>, vector<24x4xbf16>
    %c0_1 = arith.constant 0 : index
    %c0_2 = arith.constant 0 : index
    %c0_3 = arith.constant 0 : index
    %1 = vector.load %arg2[%c0_1, %c0_2, %c0_3] : memref<3x4x32xbf16, #tpu.memory_space<vmem>>, vector<1x4x32xbf16>
    %2 = vector.shape_cast %1 : vector<1x4x32xbf16> to vector<4x32xbf16>
    %cst = arith.constant dense<0.000000e+00> : vector<24x32xf32>
    %3 = tpu.matmul %0, %2, %cst {dimension_numbers = #tpu.dot_dimension_numbers<[1], [0], [0], [1], [0, 0, 1, 1], [], []>} : vector<24x4xbf16>, vector<4x32xbf16>, vector<24x32xf32> -> vector<24x32xf32>
    %c0_4 = arith.constant 0 : index
    %c0_5 = arith.constant 0 : index
    %c0_6 = arith.constant 0 : index
    %4 = vector.load %arg3[%c0_4, %c0_5, %c0_6] : memref<3x1x32xf32, #tpu.memory_space<vmem>>, vector<1x1x32xf32>
    %5 = vector.shape_cast %4 : vector<1x1x32xf32> to vector<1x32xf32>
    %6 = vector.broadcast %5 : vector<1x32xf32> to vector<24x32xf32>
    %7 = arith.addf %3, %6 : vector<24x32xf32>
    %8 = arith.truncf %7 : vector<24x32xf32> to vector<24x32xbf16>
    %c0_7 = arith.constant 0 : index
    %c0_8 = arith.constant 0 : index
    %9 = vector.load %arg4[%c0_7, %c0_8] : memref<24x32xbf16, #tpu.memory_space<vmem>>, vector<24x32xbf16>
    tpu.vector_store %arg4[%c0_7, %c0_8], %8 {strides = array<i32>} : memref<24x32xbf16, #tpu.memory_space<vmem>>, vector<24x32xbf16>,
    %c1 = arith.constant 1 : index
    %c0_9 = arith.constant 0 : index
    %c0_10 = arith.constant 0 : index
    %10 = vector.load %arg2[%c1, %c0_9, %c0_10] : memref<3x4x32xbf16, #tpu.memory_space<vmem>>, vector<1x4x32xbf16>
    %11 = vector.shape_cast %10 : vector<1x4x32xbf16> to vector<4x32xbf16>
    %cst_11 = arith.constant dense<0.000000e+00> : vector<24x32xf32>
    %12 = tpu.matmul %0, %11, %cst_11 {dimension_numbers = #tpu.dot_dimension_numbers<[1], [0], [0], [1], [0, 0, 1, 1], [], []>} : vector<24x4xbf16>, vector<4x32xbf16>, vector<24x32xf32> -> vector<24x32xf32>
    %c1_12 = arith.constant 1 : index
    %c0_13 = arith.constant 0 : index
    %c0_14 = arith.constant 0 : index
    %13 = vector.load %arg3[%c1_12, %c0_13, %c0_14] : memref<3x1x32xf32, #tpu.memory_space<vmem>>, vector<1x1x32xf32>
    %14 = vector.shape_cast %13 : vector<1x1x32xf32> to vector<1x32xf32>
    %15 = vector.broadcast %14 : vector<1x32xf32> to vector<24x32xf32>
    %16 = arith.addf %12, %15 : vector<24x32xf32>
    %17 = arith.truncf %16 : vector<24x32xf32> to vector<24x32xbf16>
    %c0_15 = arith.constant 0 : index
    %c0_16 = arith.constant 0 : index
    %18 = vector.load %arg5[%c0_15, %c0_16] : memref<24x32xbf16, #tpu.memory_space<vmem>>, vector<24x32xbf16>
    tpu.vector_store %arg5[%c0_15, %c0_16], %17 {strides = array<i32>} : memref<24x32xbf16, #tpu.memory_space<vmem>>, vector<24x32xbf16>,
    %c2 = arith.constant 2 : index
    %c0_17 = arith.constant 0 : index
    %c0_18 = arith.constant 0 : index
    %19 = vector.load %arg2[%c2, %c0_17, %c0_18] : memref<3x4x32xbf16, #tpu.memory_space<vmem>>, vector<1x4x32xbf16>
    %20 = vector.shape_cast %19 : vector<1x4x32xbf16> to vector<4x32xbf16>
    %cst_19 = arith.constant dense<0.000000e+00> : vector<24x32xf32>
    %21 = tpu.matmul %0, %20, %cst_19 {dimension_numbers = #tpu.dot_dimension_numbers<[1], [0], [0], [1], [0, 0, 1, 1], [], []>} : vector<24x4xbf16>, vector<4x32xbf16>, vector<24x32xf32> -> vector<24x32xf32>
    %c2_20 = arith.constant 2 : index
    %c0_21 = arith.constant 0 : index
    %c0_22 = arith.constant 0 : index
    %22 = vector.load %arg3[%c2_20, %c0_21, %c0_22] : memref<3x1x32xf32, #tpu.memory_space<vmem>>, vector<1x1x32xf32>
    %23 = vector.shape_cast %22 : vector<1x1x32xf32> to vector<1x32xf32>
    %24 = vector.broadcast %23 : vector<1x32xf32> to vector<24x32xf32>
    %25 = arith.addf %21, %24 : vector<24x32xf32>
    %26 = arith.truncf %25 : vector<24x32xf32> to vector<24x32xbf16>
    %c0_23 = arith.constant 0 : index
    %c0_24 = arith.constant 0 : index
    %27 = vector.load %arg6[%c0_23, %c0_24] : memref<24x32xbf16, #tpu.memory_space<vmem>>, vector<24x32xbf16>
    tpu.vector_store %arg6[%c0_23, %c0_24], %26 {strides = array<i32>} : memref<24x32xbf16, #tpu.memory_space<vmem>>, vector<24x32xbf16>,
    return
  }
  func.func @transform_0(%arg0: i32) -> (i32, i32) {
    %c0_i32 = arith.constant 0 : i32
    %c0_i32_0 = arith.constant 0 : i32
    return %arg0, %c0_i32 : i32, i32
  }
  func.func @transform_1(%arg0: i32) -> (i32, i32, i32) {
    %c0_i32 = arith.constant 0 : i32
    %c0_i32_0 = arith.constant 0 : i32
    %c0_i32_1 = arith.constant 0 : i32
    %c0_i32_2 = arith.constant 0 : i32
    return %c0_i32, %c0_i32_0, %c0_i32_1 : i32, i32, i32
  }
  func.func @transform_2(%arg0: i32) -> (i32, i32, i32) {
    %c0_i32 = arith.constant 0 : i32
    %c0_i32_0 = arith.constant 0 : i32
    %c0_i32_1 = arith.constant 0 : i32
    %c0_i32_2 = arith.constant 0 : i32
    return %c0_i32, %c0_i32_0, %c0_i32_1 : i32, i32, i32
  }
  func.func @transform_3(%arg0: i32) -> (i32, i32) {
    %c0_i32 = arith.constant 0 : i32
    %c0_i32_0 = arith.constant 0 : i32
    return %arg0, %c0_i32 : i32, i32
  }
  func.func @transform_4(%arg0: i32) -> (i32, i32) {
    %c0_i32 = arith.constant 0 : i32
    %c0_i32_0 = arith.constant 0 : i32
    return %arg0, %c0_i32 : i32, i32
  }
  func.func @transform_5(%arg0: i32) -> (i32, i32) {
    %c0_i32 = arith.constant 0 : i32
    %c0_i32_0 = arith.constant 0 : i32
    return %arg0, %c0_i32 : i32, i32
  }
}

</mosaic_0001>

<llo_original>
// kernel: tpu_custom_call.1
$region0: #{tpu_custom_call.1}
  #allocation0 [shape = 'u32[]', space=smem, size = 0x4, offset = 0x4, fixed_abs, tag = 'smem constant byte address 0x4 - core index']
  #allocation1 [shape = 'u32[144,128]{1,0:T(1,128)}', space=vmem, size = 0x12000, scoped, tag = 'internal scratch']
  %s0 = inlined_call_operand.vmem [shape: bf16[24,4], index: 0, kind: input, shape index: {}]
  %s1 = inlined_call_operand.vmem [shape: bf16[3,4,32], index: 1, kind: input, shape index: {}]
  %s2 = inlined_call_operand.vmem [shape: f32[3,1,32], index: 2, kind: input, shape index: {}]
  %s3 = inlined_call_operand.hbm [shape: bf16[24,32], index: 3, kind: output, shape index: {0}]
  %s4 = inlined_call_operand.hbm [shape: bf16[24,32], index: 4, kind: output, shape index: {1}]
  %s5 = inlined_call_operand.hbm [shape: bf16[24,32], index: 5, kind: output, shape index: {2}]
  %6 = xla_tuple %s3, %s4, %s5
  %s7 = sld [smem:[#allocation0]]
  $region38: #{tpu_custom_call.1} parent=0
    _
  %s9 = ssub.s32 1, %s7
  %s10 = scalar_select 0, %s9, %s7
  $region1: #{tpu_custom_call.1} parent=0
    #allocation2 [shape = 'u8[6144]{0}', space=vmem, size = 0x1800, scoped, tag = 'output window, operand 0, single buffered']
    #allocation3 [shape = 's32[1]{0}', space=sflag, size = 0x4, scoped, tag = 'scoped memory for tpu_custom_call.1']
    #allocation4 [shape = 'u8[6144]{0}', space=vmem, size = 0x1800, scoped, tag = 'output window, operand 1, single buffered']
    #allocation5 [shape = 's32[1]{0}', space=sflag, size = 0x4, scoped, tag = 'scoped memory for tpu_custom_call.1']
    #allocation6 [shape = 'u8[6144]{0}', space=vmem, size = 0x1800, scoped, tag = 'output window, operand 2, single buffered']
    %11 = vsyncpa [#allocation3], 0
    %12 = vsyncpa [#allocation5], 0
    // Predicated region
    $region2: #{tpu_custom_call.1} parent=1 // pred_check
      _
    $region3: #{tpu_custom_call.1} parent=1 // pred_check_branch
      %14 = sbr.rel (0) target = $region5
    $region4: #{tpu_custom_call.1} parent=1 // pred_region
      _
    $region5: #{tpu_custom_call.1} parent=1 // pred_fallthru
      _
    // Predicated region
    $region6: #{tpu_custom_call.1} parent=1 // pred_check
      _
    $region7: #{tpu_custom_call.1} parent=1 // pred_check_branch
      %16 = sbr.rel (0) target = $region9
    $region8: #{tpu_custom_call.1} parent=1 // pred_region
      _
    $region9: #{tpu_custom_call.1} parent=1 // pred_fallthru
      _
    // Predicated region
    $region10: #{tpu_custom_call.1} parent=1 // pred_check
      _
    $region11: #{tpu_custom_call.1} parent=1 // pred_check_branch
      %18 = sbr.rel (0) target = $region13
    $region12: #{tpu_custom_call.1} parent=1 // pred_region
      _
    $region13: #{tpu_custom_call.1} parent=1 // pred_fallthru
      _
    %v20 = vld [vmem:[%s0] sm:$0xf]
    %v21 = vld [vmem:[%s0 + $0x4] sm:$0xf]
    %v22 = vld [vmem:[%s0 + $0x8] sm:$0xf]
    %v23 = vld [vmem:[%s1] sm:$0x3]
    %v24 = vld [vmem:[%s2] sm:$0x1]
    %v26 = vlaneseq
    %v27 = vshrl.u32 %v26, 7
    %v28 = vsub.s32 0, %v27
    %v29 = vrot.slane %v24, %v28
    %v34 = vunpack.c.l.b16 %v20
    %v35 = vunpack.c.l.b16 %v21
    %v36 = vunpack.c.l.b16 %v22
    %v37 = vpack.c.b16 %v35, %v34
    %v38 = vpack.c.b16 %v36, %v36
    %vm39 = vcmask 31744
    %v41 = vsel %vm39, %v37, 0
    %v44 = vsel %vm39, %v38, 0
    %vm46 = vcmask 1041408
    %v48 = vsel %vm46, %v23, 0
    %50 = vmatprep.subr.bf16.mxu0 0
    %51 = vmatpush1.bf16.msra.mxu0 %v48
    %52 = vmatprep.subr.bf16.mxu0 0
    %53 = vmatpush1.bf16.msra.mxu0 0
    %54 = vmatprep.subr.bf16.mxu0 0
    %55 = vmatpush1.bf16.msra.mxu0 0
    %56 = vmatprep.subr.bf16.mxu0 0
    %57 = vmatpush1.bf16.msra.mxu0 0
    %58 = vmatprep.subr.bf16.mxu0 0
    %59 = vmatpush1.bf16.msra.mxu0 0
    %60 = vmatprep.subr.bf16.mxu0 0
    %61 = vmatpush1.bf16.msra.mxu0 0
    %62 = vmatprep.subr.bf16.mxu0 0
    %63 = vmatpush1.bf16.msra.mxu0 0
    %64 = vmatprep.subr.bf16.mxu0 0
    %65 = vmatpush1.bf16.msra.mxu0 0
    %66 = vmatprep.subr.bf16.mxu0 0
    %67 = vmatpush1.bf16.msra.mxu0 0
    %68 = vmatprep.subr.bf16.mxu0 0
    %69 = vmatpush1.bf16.msra.mxu0 0
    %70 = vmatprep.subr.bf16.mxu0 0
    %71 = vmatpush1.bf16.msra.mxu0 0
    %72 = vmatprep.subr.bf16.mxu0 0
    %73 = vmatpush1.bf16.msra.mxu0 0
    %74 = vmatprep.subr.bf16.mxu0 0
    %75 = vmatpush1.bf16.msra.mxu0 0
    %76 = vmatprep.subr.bf16.mxu0 0
    %77 = vmatpush1.bf16.msra.mxu0 0
    %78 = vmatprep.subr.bf16.mxu0 0
    %79 = vmatpush1.bf16.msra.mxu0 0
    %80 = vmatprep.subr.bf16.mxu0 0
    %81 = vmatpush1.bf16.msra.mxu0 0
    %82 = vmatprep.mubr.bf16.mxu0 0
    %83 = vmatmul.mubr.bf16.gmra.mrb[0].mxu0 %v41
    %v84 = vpop.f32.mrb[0].mxu0
    %v85 = vadd.f32 %v29, %v84
    %v86 = vpop.f32.mrb[0].mxu0
    %v87 = vpop.f32.mrb[0].mxu0
    %v88 = vadd.f32 %v29, %v87
    %v89 = vpop.f32.mrb[0].mxu0
    %90 = vmatprep.mubr.bf16.mxu0 0
    %91 = vmatmul.mubr.bf16.gmra.mrb[0].mxu0 %v44
    %v92 = vpop.f32.mrb[0].mxu0
    %v93 = vadd.f32 %v29, %v92
    %v94 = vpop.f32.mrb[0].mxu0
    %v95 = vpop.f32.mrb[0].mxu0
    %v96 = vpop.f32.mrb[0].mxu0
    %97 = vdwg.mxu0
    %v98 = vpack.c.bf16 %v88, %v85
    %v99 = vpack.c.bf16 %v93, %v93
    %v102 = vunpack.c.l.b16 %v98
    %v103 = vunpack.c.h.b16 %v98
    %v104 = vunpack.c.l.b16 %v99
    %v105 = vpack.c.b16 %v102, %v102
    %v106 = vpack.c.b16 %v103, %v103
    %v107 = vpack.c.b16 %v104, %v104
    %vm111 = vcmask 257024
    %112 = vst.msk [vmem:[#allocation2] sm:$0xf] %vm111, %v105
    %113 = vst.msk [vmem:[#allocation2 + $0x4] sm:$0xf] %vm111, %v106
    %114 = vst.msk [vmem:[#allocation2 + $0x8] sm:$0xf] %vm111, %v107
    %s115 = scalar_lea.vmem %s1, 2
    %v116 = vld [vmem:[%s115] sm:$0x3]
    %s117 = scalar_lea.vmem %s2, 1
    %v118 = vld [vmem:[%s117] sm:$0x1]
    %v120 = vlaneseq
    %v121 = vshrl.u32 %v120, 7
    %v122 = vsub.s32 0, %v121
    %v123 = vrot.slane %v118, %v122
    %v126 = vsel %vm46, %v116, 0
    %128 = vmatprep.subr.bf16.mxu0 0
    %129 = vmatpush1.bf16.msra.mxu0 %v126
    %130 = vmatprep.subr.bf16.mxu0 0
    %131 = vmatpush1.bf16.msra.mxu0 0
    %132 = vmatprep.subr.bf16.mxu0 0
    %133 = vmatpush1.bf16.msra.mxu0 0
    %134 = vmatprep.subr.bf16.mxu0 0
    %135 = vmatpush1.bf16.msra.mxu0 0
    %136 = vmatprep.subr.bf16.mxu0 0
    %137 = vmatpush1.bf16.msra.mxu0 0
    %138 = vmatprep.subr.bf16.mxu0 0
    %139 = vmatpush1.bf16.msra.mxu0 0
    %140 = vmatprep.subr.bf16.mxu0 0
    %141 = vmatpush1.bf16.msra.mxu0 0
    %142 = vmatprep.subr.bf16.mxu0 0
    %143 = vmatpush1.bf16.msra.mxu0 0
    %144 = vmatprep.subr.bf16.mxu0 0
    %145 = vmatpush1.bf16.msra.mxu0 0
    %146 = vmatprep.subr.bf16.mxu0 0
    %147 = vmatpush1.bf16.msra.mxu0 0
    %148 = vmatprep.subr.bf16.mxu0 0
    %149 = vmatpush1.bf16.msra.mxu0 0
    %150 = vmatprep.subr.bf16.mxu0 0
    %151 = vmatpush1.bf16.msra.mxu0 0
    %152 = vmatprep.subr.bf16.mxu0 0
    %153 = vmatpush1.bf16.msra.mxu0 0
    %154 = vmatprep.subr.bf16.mxu0 0
    %155 = vmatpush1.bf16.msra.mxu0 0
    %156 = vmatprep.subr.bf16.mxu0 0
    %157 = vmatpush1.bf16.msra.mxu0 0
    %158 = vmatprep.subr.bf16.mxu0 0
    %159 = vmatpush1.bf16.msra.mxu0 0
    %160 = vmatprep.mubr.bf16.mxu0 0
    %161 = vmatmul.mubr.bf16.gmra.mrb[0].mxu0 %v41
    %v162 = vpop.f32.mrb[0].mxu0
    %v163 = vadd.f32 %v123, %v162
    %v164 = vpop.f32.mrb[0].mxu0
    %v165 = vpop.f32.mrb[0].mxu0
    %v166 = vadd.f32 %v123, %v165
    %v167 = vpop.f32.mrb[0].mxu0
    %168 = vmatprep.mubr.bf16.mxu0 0
    %169 = vmatmul.mubr.bf16.gmra.mrb[0].mxu0 %v44
    %v170 = vpop.f32.mrb[0].mxu0
    %v171 = vadd.f32 %v123, %v170
    %v172 = vpop.f32.mrb[0].mxu0
    %v173 = vpop.f32.mrb[0].mxu0
    %v174 = vpop.f32.mrb[0].mxu0
    %175 = vdwg.mxu0
    %v176 = vpack.c.bf16 %v166, %v163
    %v177 = vpack.c.bf16 %v171, %v171
    %v180 = vunpack.c.l.b16 %v176
    %v181 = vunpack.c.h.b16 %v176
    %v182 = vunpack.c.l.b16 %v177
    %v183 = vpack.c.b16 %v180, %v180
    %v184 = vpack.c.b16 %v181, %v181
    %v185 = vpack.c.b16 %v182, %v182
    %189 = vst.msk [vmem:[#allocation4] sm:$0xf] %vm111, %v183
    %190 = vst.msk [vmem:[#allocation4 + $0x4] sm:$0xf] %vm111, %v184
    %191 = vst.msk [vmem:[#allocation4 + $0x8] sm:$0xf] %vm111, %v185
    %s192 = scalar_lea.vmem %s1, 4
    %v193 = vld [vmem:[%s192] sm:$0x3]
    %s194 = scalar_lea.vmem %s2, 2
    %v195 = vld [vmem:[%s194] sm:$0x1]
    %v197 = vlaneseq
    %v198 = vshrl.u32 %v197, 7
    %v199 = vsub.s32 0, %v198
    %v200 = vrot.slane %v195, %v199
    %v203 = vsel %vm46, %v193, 0
    %205 = vmatprep.subr.bf16.mxu0 0
    %206 = vmatpush1.bf16.msra.mxu0 %v203
    %207 = vmatprep.subr.bf16.mxu0 0
    %208 = vmatpush1.bf16.msra.mxu0 0
    %209 = vmatprep.subr.bf16.mxu0 0
    %210 = vmatpush1.bf16.msra.mxu0 0
    %211 = vmatprep.subr.bf16.mxu0 0
    %212 = vmatpush1.bf16.msra.mxu0 0
    %213 = vmatprep.subr.bf16.mxu0 0
    %214 = vmatpush1.bf16.msra.mxu0 0
    %215 = vmatprep.subr.bf16.mxu0 0
    %216 = vmatpush1.bf16.msra.mxu0 0
    %217 = vmatprep.subr.bf16.mxu0 0
    %218 = vmatpush1.bf16.msra.mxu0 0
    %219 = vmatprep.subr.bf16.mxu0 0
    %220 = vmatpush1.bf16.msra.mxu0 0
    %221 = vmatprep.subr.bf16.mxu0 0
    %222 = vmatpush1.bf16.msra.mxu0 0
    %223 = vmatprep.subr.bf16.mxu0 0
    %224 = vmatpush1.bf16.msra.mxu0 0
    %225 = vmatprep.subr.bf16.mxu0 0
    %226 = vmatpush1.bf16.msra.mxu0 0
    %227 = vmatprep.subr.bf16.mxu0 0
    %228 = vmatpush1.bf16.msra.mxu0 0
    %229 = vmatprep.subr.bf16.mxu0 0
    %230 = vmatpush1.bf16.msra.mxu0 0
    %231 = vmatprep.subr.bf16.mxu0 0
    %232 = vmatpush1.bf16.msra.mxu0 0
    %233 = vmatprep.subr.bf16.mxu0 0
    %234 = vmatpush1.bf16.msra.mxu0 0
    %235 = vmatprep.subr.bf16.mxu0 0
    %236 = vmatpush1.bf16.msra.mxu0 0
    %237 = vmatprep.mubr.bf16.mxu0 0
    %238 = vmatmul.mubr.bf16.gmra.mrb[0].mxu0 %v41
    %v239 = vpop.f32.mrb[0].mxu0
    %v240 = vadd.f32 %v200, %v239
    %v241 = vpop.f32.mrb[0].mxu0
    %v242 = vpop.f32.mrb[0].mxu0
    %v243 = vadd.f32 %v200, %v242
    %v244 = vpop.f32.mrb[0].mxu0
    %245 = vmatprep.mubr.bf16.mxu0 0
    %246 = vmatmul.mubr.bf16.gmra.mrb[0].mxu0 %v44
    %v247 = vpop.f32.mrb[0].mxu0
    %v248 = vadd.f32 %v200, %v247
    %v249 = vpop.f32.mrb[0].mxu0
    %v250 = vpop.f32.mrb[0].mxu0
    %v251 = vpop.f32.mrb[0].mxu0
    %252 = vdwg.mxu0
    %v253 = vpack.c.bf16 %v243, %v240
    %v254 = vpack.c.bf16 %v248, %v248
    %v257 = vunpack.c.l.b16 %v253
    %v258 = vunpack.c.h.b16 %v253
    %v259 = vunpack.c.l.b16 %v254
    %v260 = vpack.c.b16 %v257, %v257
    %v261 = vpack.c.b16 %v258, %v258
    %v262 = vpack.c.b16 %v259, %v259
    %266 = vst.msk [vmem:[#allocation6] sm:$0xf] %vm111, %v260
    %267 = vst.msk [vmem:[#allocation6 + $0x4] sm:$0xf] %vm111, %v261
    %268 = vst.msk [vmem:[#allocation6 + $0x8] sm:$0xf] %vm111, %v262
    // Predicated region
    $region14: #{tpu_custom_call.1} parent=1 // pred_check
      _
    $region15: #{tpu_custom_call.1} parent=1 // pred_check_branch
      %270 = sbr.rel (0) target = $region17
    $region16: #{tpu_custom_call.1} parent=1 // pred_region
      %s272 = ssub.s32 192, 192
      %273 = vsyncadd [#allocation3], %s272
      %s274 = sshll.u32 [#allocation2], 4
      %s275 = int_to_ptr.vmem [resolvable:$true] %s274
      %280 = dma.vmem_to_hbm [thread:$0]  %s275, 192, %s3, [#allocation3], 64, 64, 4
    $region17: #{tpu_custom_call.1} parent=1 // pred_fallthru
      _
    // Predicated region
    $region18: #{tpu_custom_call.1} parent=1 // pred_check
      _
    $region19: #{tpu_custom_call.1} parent=1 // pred_check_branch
      %282 = sbr.rel (0) target = $region21
    $region20: #{tpu_custom_call.1} parent=1 // pred_region
      %s284 = ssub.s32 192, 192
      %285 = vsyncadd [#allocation5], %s284
      %s286 = sshll.u32 [#allocation4], 4
      %s287 = int_to_ptr.vmem [resolvable:$true] %s286
      %292 = dma.vmem_to_hbm [thread:$0]  %s287, 192, %s4, [#allocation5], 64, 64, 4
    $region21: #{tpu_custom_call.1} parent=1 // pred_fallthru
      _
    // Predicated region
    $region22: #{tpu_custom_call.1} parent=1 // pred_check
      _
    $region23: #{tpu_custom_call.1} parent=1 // pred_check_branch
      %294 = sbr.rel (0) target = $region25
    $region24: #{tpu_custom_call.1} parent=1 // pred_region
      %s296 = ssub.s32 192, 192
      %297 = vsyncadd [#allocation5], %s296
      %s298 = sshll.u32 [#allocation6], 4
      %s299 = int_to_ptr.vmem [resolvable:$true] %s298
      %304 = dma.vmem_to_hbm [thread:$0]  %s299, 192, %s5, [#allocation5], 64, 64, 4
    $region25: #{tpu_custom_call.1} parent=1 // pred_fallthru
      _
    // Predicated region
    $region26: #{tpu_custom_call.1} parent=1 // pred_check
      _
    $region27: #{tpu_custom_call.1} parent=1 // pred_check_branch
      %306 = sbr.rel (0) target = $region29
    $region28: #{tpu_custom_call.1} parent=1 // pred_region
      %307 = dma.done [#allocation3], 192
    $region29: #{tpu_custom_call.1} parent=1 // pred_fallthru
      _
    // Predicated region
    $region30: #{tpu_custom_call.1} parent=1 // pred_check
      _
    $region31: #{tpu_custom_call.1} parent=1 // pred_check_branch
      %309 = sbr.rel (0) target = $region33
    $region32: #{tpu_custom_call.1} parent=1 // pred_region
      %310 = dma.done [#allocation5], 192
    $region33: #{tpu_custom_call.1} parent=1 // pred_fallthru
      _
    // Predicated region
    $region34: #{tpu_custom_call.1} parent=1 // pred_check
      _
    $region35: #{tpu_custom_call.1} parent=1 // pred_check_branch
      %312 = sbr.rel (0) target = $region37
    $region36: #{tpu_custom_call.1} parent=1 // pred_region
      %313 = dma.done [#allocation5], 192
    $region37: #{tpu_custom_call.1} parent=1 // pred_fallthru
      _
    %314 = vsyncpa [#allocation3], 1
    %315 = vsyncpa [#allocation5], 1

</llo_original>
